<compile_context>
chip_gen: v7x
topology: tpu7x:2x2x1
jax: 0.10.0
libtpu: 0.0.40
codegen_flags: <defaults>
</compile_context>

<pallas_src>
import jax
import jax.numpy as jnp
import numpy as np
from jax import lax
from jax.experimental import pallas as pl
from jax.experimental.pallas import tpu as pltpu


def _round_up(x, m):
    return (x + m - 1) // m * m


def _make_cnn_kernel(C, L_valid):
    """C = word_out_channels, L_valid = L - 2 (true conv13 output length)."""

    def cnn_kernel(emb_ref, wf_ref, bias_ref, wl_ref, bl_ref, out_ref, acc_ref):
        TB, Lt, D = emb_ref.shape           # (batch tile, padded time, emb dim)
        K, _, Cpad = wf_ref.shape           # K = 5 fused shifts, Cpad = lane-padded 3C
        Lout = Lt - (K - 1)                 # padded output length (multiple of 8)

        # One cheap upcast pass; shift-slicing at odd time offsets is done on the f32
        # value (well-supported layout path), bf16 cast happens on each aligned slice.
        emb = emb_ref[...].astype(jnp.float32)

        # Fused conv: 5 shifted (TB*Lout, D) @ (D, Cpad) bf16 MXU matmuls, accumulated
        # in f32 in a VMEM scratch so vreg pressure stays bounded for larger tiles.
        for s in range(K):
            x = emb[:, s:s + Lout, :].reshape(TB * Lout, D).astype(jnp.bfloat16)
            y = jnp.dot(x, wf_ref[s], preferred_element_type=jnp.float32)
            if s == 0:
                acc_ref[...] = y
            else:
                acc_ref[...] += y

        act = acc_ref[...].reshape(TB, Lout, Cpad) + bias_ref[...][None]
        act = jnp.maximum(act, 0.0)                      # ReLU

        # Mask time-steps that are invalid per conv group (k=3 -> grp0, k=4 -> grp1,
        # k=5 -> grp2) plus the zero-padded tail rows. Zero-masking after ReLU is
        # exact for the subsequent max-pool (all valid values are >= 0).
        t = lax.broadcasted_iota(jnp.int32, (Lout, Cpad), 0)
        c = lax.broadcasted_iota(jnp.int32, (Lout, Cpad), 1)
        grp = jnp.where(c < C, 0, jnp.where(c < 2 * C, 1, jnp.where(c < 3 * C, 2, 0)))
        valid = t < (L_valid - grp)
        act = jnp.where(valid[None], act, 0.0)

        feat = jnp.max(act, axis=1)                      # max-pool over time -> (TB, Cpad)

        # TODO(synk): dropout (p=0.5) is identity here (eval-mode semantics).
        out = jnp.dot(feat.astype(jnp.bfloat16), wl_ref[...],
                      preferred_element_type=jnp.float32)
        out_ref[...] = (out + bl_ref[...]).astype(out_ref.dtype)

    return cnn_kernel


def cnn_forward(token_ids, params):
    # ---- plain-JAX glue: embedding gather + parameter fusion / lane padding ----
    # TODO(synk): the embedding gather could be fused into the kernel via scalar-
    # prefetched token ids + per-row DMA gather; kept as JAX glue here (a row gather
    # is not a rectangular BlockSpec), but the activation is shipped as bf16.
    emb = params['embedding'][token_ids]                 # (B, L, D) f32
    B, L, D = emb.shape
    C = params['w3'].shape[-1]
    O = params['wl'].shape[-1]
    assert L >= 5, "sequence length must be >= 5 (conv15 kernel height)"

    L_valid = L - 2                                      # conv13 output length
    Lout = _round_up(L_valid, 8)                         # tile-aligned pooled length
    Lt = Lout + 4                                        # padded time so 5 shifts fit
    Cpad = _round_up(3 * C, 128)                         # lane-dense fused channels
    Opad = _round_up(O, 128)                             # lane-dense output
    TB = min(B, 8)                                       # batch tile
    Bp = _round_up(B, TB)

    # Batch/time zero-pad + bf16 cast (halves the dominant HBM->VMEM DMA traffic).
    emb_bf = jnp.pad(emb, ((0, Bp - B), (0, Lt - L), (0, 0))).astype(jnp.bfloat16)

    # Fuse conv weights: zero-pad k=3/k=4 to 5 shifts, concat along channels,
    # lane-pad channels. Channel order [conv13 | conv14 | conv15] matches the row
    # order of the final linear weight (torch.cat((x1, x2, x3), 1)).
    def pad_shifts(w):
        return jnp.pad(w, ((0, 5 - w.shape[0]), (0, 0), (0, 0)))

    wf = jnp.concatenate([pad_shifts(params['w3']),
                          pad_shifts(params['w4']),
                          pad_shifts(params['w5'])], axis=-1)        # (5, D, 3C)
    wf = jnp.pad(wf, ((0, 0), (0, 0), (0, Cpad - 3 * C))).astype(jnp.bfloat16)
    bias = jnp.concatenate([params['b3'], params['b4'], params['b5']], axis=-1)
    bias = jnp.pad(bias, ((0, 0), (0, Cpad - 3 * C)))                # (1, Cpad) f32
    wl = jnp.pad(params['wl'], ((0, Cpad - 3 * C), (0, Opad - O))).astype(jnp.bfloat16)
    bl = jnp.pad(params['bl'], ((0, 0), (0, Opad - O)))              # (1, Opad) f32

    kernel = _make_cnn_kernel(C, L_valid)

    out = pl.pallas_call(
        kernel,
        out_shape=jax.ShapeDtypeStruct((Bp, Opad), jnp.float32),
        grid=(Bp // TB,),
        in_specs=[
            pl.BlockSpec((TB, Lt, D), lambda i: (i, 0, 0)),      # emb: batch-tiled
            pl.BlockSpec((5, D, Cpad), lambda i: (0, 0, 0)),     # fused conv weight (resident)
            pl.BlockSpec((1, Cpad), lambda i: (0, 0)),           # fused conv bias
            pl.BlockSpec((Cpad, Opad), lambda i: (0, 0)),        # linear weight
            pl.BlockSpec((1, Opad), lambda i: (0, 0)),           # linear bias
        ],
        out_specs=pl.BlockSpec((TB, Opad), lambda i: (i, 0)),
        scratch_shapes=[pltpu.VMEM((TB * Lout, Cpad), jnp.float32)],
        compiler_params=pltpu.CompilerParams(
            dimension_semantics=("parallel",),
            vmem_limit_bytes=32 * 1024 * 1024,
        ),
    )(emb_bf, wf, bias, wl, bl)

    return out[:B, :O]


def make_params(key, vocab, D, C, O):
    ks = jax.random.split(key, 9)
    scale = 0.1
    return {
        'embedding': scale * jax.random.normal(ks[0], (vocab, D), jnp.float32),
        'w3': scale * jax.random.normal(ks[1], (3, D, C), jnp.float32),
        'b3': scale * jax.random.normal(ks[2], (1, C), jnp.float32),
        'w4': scale * jax.random.normal(ks[3], (4, D, C), jnp.float32),
        'b4': scale * jax.random.normal(ks[4], (1, C), jnp.float32),
        'w5': scale * jax.random.normal(ks[5], (5, D, C), jnp.float32),
        'b5': scale * jax.random.normal(ks[6], (1, C), jnp.float32),
        'wl': scale * jax.random.normal(ks[7], (3 * C, O), jnp.float32),
        'bl': scale * jax.random.normal(ks[8], (1, O), jnp.float32),
    }


def cnn_reference(token_ids, params):
    """Pure-JAX (f32) reference mirroring the PyTorch forward (eval mode)."""
    emb = params['embedding'][token_ids]                 # (B, L, D)
    B, L, D = emb.shape

    def conv_pool(w, b):
        k = w.shape[0]
        Lout = L - k + 1
        acc = jnp.zeros((B, Lout, w.shape[-1]), jnp.float32)
        for s in range(k):
            acc = acc + jnp.einsum('bld,dc->blc', emb[:, s:s + Lout, :], w[s])
        acc = jnp.maximum(acc + b[None, :, :], 0.0)
        return jnp.max(acc, axis=1)

    feat = jnp.concatenate([conv_pool(params['w3'], params['b3']),
                            conv_pool(params['w4'], params['b4']),
                            conv_pool(params['w5'], params['b5'])], axis=-1)
    return feat @ params['wl'] + params['bl']


if __name__ == "__main__":
    # Small shapes consistent with the module.
    B, L = 2, 16                 # batch, sequence length (>= 5 for conv15)
    vocab = 100                  # word_vocab_size
    D = 32                       # word_embedding_dim
    C = 8                        # word_out_channels
    O = 4                        # output_size

    key = jax.random.PRNGKey(0)
    k_tok, k_par = jax.random.split(key)
    token_ids = jax.random.randint(k_tok, (B, L), 0, vocab)
    params = make_params(k_par, vocab, D, C, O)

    out = jax.jit(cnn_forward)(token_ids, params)
    jax.block_until_ready(out)

    ref = cnn_reference(token_ids, params)
    # Tolerance accounts for bf16 matmul inputs (f32 accumulation) in the kernel.
    np.testing.assert_allclose(np.asarray(out), np.asarray(ref), rtol=2e-2, atol=2e-2)

    print("KERNEL_OK")
</pallas_src>

<mosaic_0001>
module attributes {stable_mosaic.version = 11 : i64} {
  func.func @cnn_kernel(%arg0: i32, %arg1: memref<2x20x32xbf16, #tpu.memory_space<vmem>>, %arg2: memref<5x32x128xbf16, #tpu.memory_space<vmem>>, %arg3: memref<1x128xf32, #tpu.memory_space<vmem>>, %arg4: memref<128x128xbf16, #tpu.memory_space<vmem>>, %arg5: memref<1x128xf32, #tpu.memory_space<vmem>>, %arg6: memref<2x128xf32, #tpu.memory_space<vmem>>, %arg7: memref<32x128xf32, #tpu.memory_space<vmem>>) attributes {dimension_semantics = [#tpu.dimension_semantics<parallel>], iteration_bounds = array<i64: 1>, scalar_prefetch = 0 : i64, scratch_operands = 1 : i64, tpu.core_type = #tpu.core_type<tc>, window_params = [{transform_indices = @transform_0, window_bounds = array<i64: 2, 20, 32>}, {pipeline_mode = #tpu.pipeline_mode<synchronous>, transform_indices = @transform_1, window_bounds = array<i64: 5, 32, 128>}, {pipeline_mode = #tpu.pipeline_mode<synchronous>, transform_indices = @transform_2, window_bounds = array<i64: 1, 128>}, {pipeline_mode = #tpu.pipeline_mode<synchronous>, transform_indices = @transform_3, window_bounds = array<i64: 128, 128>}, {pipeline_mode = #tpu.pipeline_mode<synchronous>, transform_indices = @transform_4, window_bounds = array<i64: 1, 128>}, {transform_indices = @transform_5, window_bounds = array<i64: 2, 128>}]} {
    %c0 = arith.constant 0 : index
    %c0_0 = arith.constant 0 : index
    %c0_1 = arith.constant 0 : index
    %0 = vector.load %arg1[%c0, %c0_0, %c0_1] : memref<2x20x32xbf16, #tpu.memory_space<vmem>>, vector<2x20x32xbf16>
    %1 = arith.extf %0 : vector<2x20x32xbf16> to vector<2x20x32xf32>
    %2 = vector.extract_strided_slice %1 {offsets = [0, 0, 0], sizes = [2, 16, 32], strides = [1, 1, 1]} : vector<2x20x32xf32> to vector<2x16x32xf32>
    %3 = vector.shape_cast %2 : vector<2x16x32xf32> to vector<32x32xf32>
    %4 = arith.truncf %3 : vector<32x32xf32> to vector<32x32xbf16>
    %c0_2 = arith.constant 0 : index
    %c0_3 = arith.constant 0 : index
    %c0_4 = arith.constant 0 : index
    %5 = vector.load %arg2[%c0_2, %c0_3, %c0_4] : memref<5x32x128xbf16, #tpu.memory_space<vmem>>, vector<1x32x128xbf16>
    %6 = vector.shape_cast %5 : vector<1x32x128xbf16> to vector<32x128xbf16>
    %cst = arith.constant dense<0.000000e+00> : vector<32x128xf32>
    %7 = tpu.matmul %4, %6, %cst {dimension_numbers = #tpu.dot_dimension_numbers<[1], [0], [0], [1], [0, 0, 1, 1], [], []>} : vector<32x32xbf16>, vector<32x128xbf16>, vector<32x128xf32> -> vector<32x128xf32>
    %c0_5 = arith.constant 0 : index
    %c0_6 = arith.constant 0 : index
    %8 = vector.load %arg7[%c0_5, %c0_6] : memref<32x128xf32, #tpu.memory_space<vmem>>, vector<32x128xf32>
    tpu.vector_store %arg7[%c0_5, %c0_6], %7 {strides = array<i32>} : memref<32x128xf32, #tpu.memory_space<vmem>>, vector<32x128xf32>,
    %9 = vector.extract_strided_slice %1 {offsets = [0, 1, 0], sizes = [2, 16, 32], strides = [1, 1, 1]} : vector<2x20x32xf32> to vector<2x16x32xf32>
    %10 = vector.shape_cast %9 : vector<2x16x32xf32> to vector<32x32xf32>
    %11 = arith.truncf %10 : vector<32x32xf32> to vector<32x32xbf16>
    %c1 = arith.constant 1 : index
    %c0_7 = arith.constant 0 : index
    %c0_8 = arith.constant 0 : index
    %12 = vector.load %arg2[%c1, %c0_7, %c0_8] : memref<5x32x128xbf16, #tpu.memory_space<vmem>>, vector<1x32x128xbf16>
    %13 = vector.shape_cast %12 : vector<1x32x128xbf16> to vector<32x128xbf16>
    %cst_9 = arith.constant dense<0.000000e+00> : vector<32x128xf32>
    %14 = tpu.matmul %11, %13, %cst_9 {dimension_numbers = #tpu.dot_dimension_numbers<[1], [0], [0], [1], [0, 0, 1, 1], [], []>} : vector<32x32xbf16>, vector<32x128xbf16>, vector<32x128xf32> -> vector<32x128xf32>
    %c0_10 = arith.constant 0 : index
    %c0_11 = arith.constant 0 : index
    %15 = vector.load %arg7[%c0_10, %c0_11] : memref<32x128xf32, #tpu.memory_space<vmem>>, vector<32x128xf32>
    %16 = arith.addf %15, %14 : vector<32x128xf32>
    %c0_12 = arith.constant 0 : index
    %c0_13 = arith.constant 0 : index
    %17 = vector.load %arg7[%c0_12, %c0_13] : memref<32x128xf32, #tpu.memory_space<vmem>>, vector<32x128xf32>
    tpu.vector_store %arg7[%c0_12, %c0_13], %16 {strides = array<i32>} : memref<32x128xf32, #tpu.memory_space<vmem>>, vector<32x128xf32>,
    %18 = vector.extract_strided_slice %1 {offsets = [0, 2, 0], sizes = [2, 16, 32], strides = [1, 1, 1]} : vector<2x20x32xf32> to vector<2x16x32xf32>
    %19 = vector.shape_cast %18 : vector<2x16x32xf32> to vector<32x32xf32>
    %20 = arith.truncf %19 : vector<32x32xf32> to vector<32x32xbf16>
    %c2 = arith.constant 2 : index
    %c0_14 = arith.constant 0 : index
    %c0_15 = arith.constant 0 : index
    %21 = vector.load %arg2[%c2, %c0_14, %c0_15] : memref<5x32x128xbf16, #tpu.memory_space<vmem>>, vector<1x32x128xbf16>
    %22 = vector.shape_cast %21 : vector<1x32x128xbf16> to vector<32x128xbf16>
    %cst_16 = arith.constant dense<0.000000e+00> : vector<32x128xf32>
    %23 = tpu.matmul %20, %22, %cst_16 {dimension_numbers = #tpu.dot_dimension_numbers<[1], [0], [0], [1], [0, 0, 1, 1], [], []>} : vector<32x32xbf16>, vector<32x128xbf16>, vector<32x128xf32> -> vector<32x128xf32>
    %c0_17 = arith.constant 0 : index
    %c0_18 = arith.constant 0 : index
    %24 = vector.load %arg7[%c0_17, %c0_18] : memref<32x128xf32, #tpu.memory_space<vmem>>, vector<32x128xf32>
    %25 = arith.addf %24, %23 : vector<32x128xf32>
    %c0_19 = arith.constant 0 : index
    %c0_20 = arith.constant 0 : index
    %26 = vector.load %arg7[%c0_19, %c0_20] : memref<32x128xf32, #tpu.memory_space<vmem>>, vector<32x128xf32>
    tpu.vector_store %arg7[%c0_19, %c0_20], %25 {strides = array<i32>} : memref<32x128xf32, #tpu.memory_space<vmem>>, vector<32x128xf32>,
    %27 = vector.extract_strided_slice %1 {offsets = [0, 3, 0], sizes = [2, 16, 32], strides = [1, 1, 1]} : vector<2x20x32xf32> to vector<2x16x32xf32>
    %28 = vector.shape_cast %27 : vector<2x16x32xf32> to vector<32x32xf32>
    %29 = arith.truncf %28 : vector<32x32xf32> to vector<32x32xbf16>
    %c3 = arith.constant 3 : index
    %c0_21 = arith.constant 0 : index
    %c0_22 = arith.constant 0 : index
    %30 = vector.load %arg2[%c3, %c0_21, %c0_22] : memref<5x32x128xbf16, #tpu.memory_space<vmem>>, vector<1x32x128xbf16>
    %31 = vector.shape_cast %30 : vector<1x32x128xbf16> to vector<32x128xbf16>
    %cst_23 = arith.constant dense<0.000000e+00> : vector<32x128xf32>
    %32 = tpu.matmul %29, %31, %cst_23 {dimension_numbers = #tpu.dot_dimension_numbers<[1], [0], [0], [1], [0, 0, 1, 1], [], []>} : vector<32x32xbf16>, vector<32x128xbf16>, vector<32x128xf32> -> vector<32x128xf32>
    %c0_24 = arith.constant 0 : index
    %c0_25 = arith.constant 0 : index
    %33 = vector.load %arg7[%c0_24, %c0_25] : memref<32x128xf32, #tpu.memory_space<vmem>>, vector<32x128xf32>
    %34 = arith.addf %33, %32 : vector<32x128xf32>
    %c0_26 = arith.constant 0 : index
    %c0_27 = arith.constant 0 : index
    %35 = vector.load %arg7[%c0_26, %c0_27] : memref<32x128xf32, #tpu.memory_space<vmem>>, vector<32x128xf32>
    tpu.vector_store %arg7[%c0_26, %c0_27], %34 {strides = array<i32>} : memref<32x128xf32, #tpu.memory_space<vmem>>, vector<32x128xf32>,
    %36 = vector.extract_strided_slice %1 {offsets = [0, 4, 0], sizes = [2, 16, 32], strides = [1, 1, 1]} : vector<2x20x32xf32> to vector<2x16x32xf32>
    %37 = vector.shape_cast %36 : vector<2x16x32xf32> to vector<32x32xf32>
    %38 = arith.truncf %37 : vector<32x32xf32> to vector<32x32xbf16>
    %c4 = arith.constant 4 : index
    %c0_28 = arith.constant 0 : index
    %c0_29 = arith.constant 0 : index
    %39 = vector.load %arg2[%c4, %c0_28, %c0_29] : memref<5x32x128xbf16, #tpu.memory_space<vmem>>, vector<1x32x128xbf16>
    %40 = vector.shape_cast %39 : vector<1x32x128xbf16> to vector<32x128xbf16>
    %cst_30 = arith.constant dense<0.000000e+00> : vector<32x128xf32>
    %41 = tpu.matmul %38, %40, %cst_30 {dimension_numbers = #tpu.dot_dimension_numbers<[1], [0], [0], [1], [0, 0, 1, 1], [], []>} : vector<32x32xbf16>, vector<32x128xbf16>, vector<32x128xf32> -> vector<32x128xf32>
    %c0_31 = arith.constant 0 : index
    %c0_32 = arith.constant 0 : index
    %42 = vector.load %arg7[%c0_31, %c0_32] : memref<32x128xf32, #tpu.memory_space<vmem>>, vector<32x128xf32>
    %43 = arith.addf %42, %41 : vector<32x128xf32>
    %c0_33 = arith.constant 0 : index
    %c0_34 = arith.constant 0 : index
    %44 = vector.load %arg7[%c0_33, %c0_34] : memref<32x128xf32, #tpu.memory_space<vmem>>, vector<32x128xf32>
    tpu.vector_store %arg7[%c0_33, %c0_34], %43 {strides = array<i32>} : memref<32x128xf32, #tpu.memory_space<vmem>>, vector<32x128xf32>,
    %c0_35 = arith.constant 0 : index
    %c0_36 = arith.constant 0 : index
    %45 = vector.load %arg7[%c0_35, %c0_36] : memref<32x128xf32, #tpu.memory_space<vmem>>, vector<32x128xf32>
    %46 = vector.shape_cast %45 : vector<32x128xf32> to vector<2x16x128xf32>
    %c0_37 = arith.constant 0 : index
    %c0_38 = arith.constant 0 : index
    %47 = vector.load %arg3[%c0_37, %c0_38] : memref<1x128xf32, #tpu.memory_space<vmem>>, vector<1x128xf32>
    %48 = vector.shape_cast %47 : vector<1x128xf32> to vector<1x1x128xf32>
    %49 = vector.broadcast %48 : vector<1x1x128xf32> to vector<2x16x128xf32>
    %50 = arith.addf %46, %49 : vector<2x16x128xf32>
    %cst_39 = arith.constant 0.000000e+00 : f32
    %51 = vector.broadcast %cst_39 : f32 to vector<2x16x128xf32>
    %52 = arith.maximumf %50, %51 : vector<2x16x128xf32>
    %53 = tpu.iota {dimensions = array<i32: 0>} : vector<16x128xi32>
    %54 = tpu.iota {dimensions = array<i32: 1>} : vector<16x128xi32>
    %c8_i32 = arith.constant 8 : i32
    %55 = vector.broadcast %c8_i32 : i32 to vector<16x128xi32>
    %56 = arith.cmpi slt, %54, %55 : vector<16x128xi32>
    %c16_i32 = arith.constant 16 : i32
    %57 = vector.broadcast %c16_i32 : i32 to vector<16x128xi32>
    %58 = arith.cmpi slt, %54, %57 : vector<16x128xi32>
    %c24_i32 = arith.constant 24 : i32
    %59 = vector.broadcast %c24_i32 : i32 to vector<16x128xi32>
    %60 = arith.cmpi slt, %54, %59 : vector<16x128xi32>
    %c2_i32 = arith.constant 2 : i32
    %c0_i32 = arith.constant 0 : i32
    %61 = vector.broadcast %c2_i32 : i32 to vector<16x128xi32>
    %62 = vector.broadcast %c0_i32 : i32 to vector<16x128xi32>
    %63 = arith.select %60, %61, %62 : vector<16x128xi1>, vector<16x128xi32>
    %c1_i32 = arith.constant 1 : i32
    %64 = vector.broadcast %c1_i32 : i32 to vector<16x128xi32>
    %65 = arith.select %58, %64, %63 : vector<16x128xi1>, vector<16x128xi32>
    %c0_i32_40 = arith.constant 0 : i32
    %66 = vector.broadcast %c0_i32_40 : i32 to vector<16x128xi32>
    %67 = arith.select %56, %66, %65 : vector<16x128xi1>, vector<16x128xi32>
    %c14_i32 = arith.constant 14 : i32
    %68 = vector.broadcast %c14_i32 : i32 to vector<16x128xi32>
    %69 = arith.subi %68, %67 : vector<16x128xi32>
    %70 = arith.cmpi slt, %53, %69 : vector<16x128xi32>
    %71 = vector.shape_cast %70 : vector<16x128xi1> to vector<1x16x128xi1>
    %cst_41 = arith.constant 0.000000e+00 : f32
    %72 = vector.shape_cast %71 : vector<1x16x128xi1> to vector<1x16x128xi1>
    %73 = vector.broadcast %72 : vector<1x16x128xi1> to vector<2x16x128xi1>
    %74 = vector.broadcast %cst_41 : f32 to vector<2x16x128xf32>
    %75 = arith.select %73, %52, %74 : vector<2x16x128xi1>, vector<2x16x128xf32>
    %cst_42 = arith.constant dense<0xFF800000> : vector<2x128xf32>
    %76 = vector.multi_reduction <maximumf>, %75, %cst_42 [1] : vector<2x16x128xf32> to vector<2x128xf32>
    %77 = arith.truncf %76 : vector<2x128xf32> to vector<2x128xbf16>
    %c0_43 = arith.constant 0 : index
    %c0_44 = arith.constant 0 : index
    %78 = vector.load %arg4[%c0_43, %c0_44] : memref<128x128xbf16, #tpu.memory_space<vmem>>, vector<128x128xbf16>
    %cst_45 = arith.constant dense<0.000000e+00> : vector<2x128xf32>
    %79 = tpu.matmul %77, %78, %cst_45 {dimension_numbers = #tpu.dot_dimension_numbers<[1], [0], [0], [1], [0, 0, 1, 1], [], []>} : vector<2x128xbf16>, vector<128x128xbf16>, vector<2x128xf32> -> vector<2x128xf32>
    %c0_46 = arith.constant 0 : index
    %c0_47 = arith.constant 0 : index
    %80 = vector.load %arg5[%c0_46, %c0_47] : memref<1x128xf32, #tpu.memory_space<vmem>>, vector<1x128xf32>
    %81 = vector.broadcast %80 : vector<1x128xf32> to vector<2x128xf32>
    %82 = arith.addf %79, %81 : vector<2x128xf32>
    %c0_48 = arith.constant 0 : index
    %c0_49 = arith.constant 0 : index
    %83 = vector.load %arg6[%c0_48, %c0_49] : memref<2x128xf32, #tpu.memory_space<vmem>>, vector<2x128xf32>
    tpu.vector_store %arg6[%c0_48, %c0_49], %82 {strides = array<i32>} : memref<2x128xf32, #tpu.memory_space<vmem>>, vector<2x128xf32>,
    return
  }
  func.func @transform_0(%arg0: i32) -> (i32, i32, i32) {
    %c0_i32 = arith.constant 0 : i32
    %c0_i32_0 = arith.constant 0 : i32
    %c0_i32_1 = arith.constant 0 : i32
    return %arg0, %c0_i32, %c0_i32_0 : i32, i32, i32
  }
  func.func @transform_1(%arg0: i32) -> (i32, i32, i32) {
    %c0_i32 = arith.constant 0 : i32
    %c0_i32_0 = arith.constant 0 : i32
    %c0_i32_1 = arith.constant 0 : i32
    %c0_i32_2 = arith.constant 0 : i32
    return %c0_i32, %c0_i32_0, %c0_i32_1 : i32, i32, i32
  }
  func.func @transform_2(%arg0: i32) -> (i32, i32) {
    %c0_i32 = arith.constant 0 : i32
    %c0_i32_0 = arith.constant 0 : i32
    %c0_i32_1 = arith.constant 0 : i32
    return %c0_i32, %c0_i32_0 : i32, i32
  }
  func.func @transform_3(%arg0: i32) -> (i32, i32) {
    %c0_i32 = arith.constant 0 : i32
    %c0_i32_0 = arith.constant 0 : i32
    %c0_i32_1 = arith.constant 0 : i32
    return %c0_i32, %c0_i32_0 : i32, i32
  }
  func.func @transform_4(%arg0: i32) -> (i32, i32) {
    %c0_i32 = arith.constant 0 : i32
    %c0_i32_0 = arith.constant 0 : i32
    %c0_i32_1 = arith.constant 0 : i32
    return %c0_i32, %c0_i32_0 : i32, i32
  }
  func.func @transform_5(%arg0: i32) -> (i32, i32) {
    %c0_i32 = arith.constant 0 : i32
    %c0_i32_0 = arith.constant 0 : i32
    return %arg0, %c0_i32 : i32, i32
  }
}

</mosaic_0001>

<llo_original>
// kernel: cnn_forward.1
$region0: #{cnn_forward.1}
  #allocation0 [shape = 'u32[]', space=smem, size = 0x4, offset = 0x4, fixed_abs, tag = 'smem constant byte address 0x4 - core index']
  #allocation1 [shape = 'u32[144,128]{1,0:T(1,128)}', space=vmem, size = 0x12000, scoped, tag = 'internal scratch']
  #allocation2 [shape = 'f32[32,128]{1,0:T(8,128)}', space=vmem, size = 0x4000, scoped, tag = 'scratch operand']
  %s0 = inlined_call_operand.vmem [shape: bf16[2,20,32], index: 0, kind: input, shape index: {}]
  %s1 = inlined_call_operand.vmem [shape: bf16[5,32,128], index: 1, kind: input, shape index: {}]
  %s2 = inlined_call_operand.vmem [shape: f32[1,128], index: 2, kind: input, shape index: {}]
  %s3 = inlined_call_operand.vmem [shape: bf16[128,128], index: 3, kind: input, shape index: {}]
  %s4 = inlined_call_operand.vmem [shape: f32[1,128], index: 4, kind: input, shape index: {}]
  %s5 = inlined_call_operand.hbm [shape: f32[2,128], index: 5, kind: output, shape index: {}]
  %s6 = sld [smem:[#allocation0]]
  $region30: #{cnn_forward.1} parent=0
    _
  %s8 = ssub.s32 1, %s6
  %s9 = scalar_select 0, %s8, %s6
  $region1: #{cnn_forward.1} parent=0
    #allocation3 [shape = 'u8[1024]{0}', space=vmem, size = 0x400, scoped, tag = 'output window, operand 0, single buffered']
    #allocation4 [shape = 's32[1]{0}', space=sflag, size = 0x4, scoped, tag = 'scoped memory for cnn_forward.1']
    %10 = vsyncpa [#allocation4], 0
    // Predicated region
    $region2: #{cnn_forward.1} parent=1 // pred_check
      _
    $region3: #{cnn_forward.1} parent=1 // pred_check_branch
      %12 = sbr.rel (0) target = $region5
    $region4: #{cnn_forward.1} parent=1 // pred_region
      _
    $region5: #{cnn_forward.1} parent=1 // pred_fallthru
      _
    // Predicated region
    $region6: #{cnn_forward.1} parent=1 // pred_check
      _
    $region7: #{cnn_forward.1} parent=1 // pred_check_branch
      %14 = sbr.rel (0) target = $region9
    $region8: #{cnn_forward.1} parent=1 // pred_region
      _
    $region9: #{cnn_forward.1} parent=1 // pred_fallthru
      _
    // Predicated region
    $region10: #{cnn_forward.1} parent=1 // pred_check
      _
    $region11: #{cnn_forward.1} parent=1 // pred_check_branch
      %16 = sbr.rel (0) target = $region13
    $region12: #{cnn_forward.1} parent=1 // pred_region
      _
    $region13: #{cnn_forward.1} parent=1 // pred_fallthru
      _
    // Predicated region
    $region14: #{cnn_forward.1} parent=1 // pred_check
      _
    $region15: #{cnn_forward.1} parent=1 // pred_check_branch
      %18 = sbr.rel (0) target = $region17
    $region16: #{cnn_forward.1} parent=1 // pred_region
      _
    $region17: #{cnn_forward.1} parent=1 // pred_fallthru
      _
    // Predicated region
    $region18: #{cnn_forward.1} parent=1 // pred_check
      _
    $region19: #{cnn_forward.1} parent=1 // pred_check_branch
      %20 = sbr.rel (0) target = $region21
    $region20: #{cnn_forward.1} parent=1 // pred_region
      _
    $region21: #{cnn_forward.1} parent=1 // pred_fallthru
      _
    %v22 = vld [vmem:[%s0] sm:$0xf]
    %v23 = vld [vmem:[%s0 + $0x4] sm:$0xf]
    %v24 = vld [vmem:[%s0 + $0x8] sm:$0x3]
    %v25 = vld [vmem:[%s0 + $0xc] sm:$0xf]
    %v26 = vld [vmem:[%s0 + $0x10] sm:$0xf]
    %v27 = vld [vmem:[%s0 + $0x14] sm:$0x3]
    %v28 = vunpack.c.l.bf16 %v22
    %v29 = vunpack.c.l.bf16 %v23
    %v30 = vunpack.c.l.bf16 %v24
    %v31 = vunpack.c.l.bf16 %v25
    %v32 = vunpack.c.l.bf16 %v26
    %v33 = vunpack.c.l.bf16 %v27
    %v34 = vpack.c.bf16 %v29, %v28
    %v35 = vpack.c.bf16 %v32, %v31
    %v36 = vld [vmem:[%s1] sm:$0xf]
    %v37 = vld [vmem:[%s1 + $0x4] sm:$0xf]
    %v38 = vld [vmem:[%s1 + $0x8] sm:$0xf]
    %v39 = vld [vmem:[%s1 + $0xc] sm:$0xf]
    %v44 = vunpack.c.l.b16 %v36
    %v45 = vunpack.c.l.b16 %v37
    %v46 = vunpack.c.l.b16 %v38
    %v47 = vunpack.c.l.b16 %v39
    %v48 = vpack.c.b16 %v45, %v44
    %v49 = vpack.c.b16 %v47, %v46
    %vm52 = vcmask 261120
    %v54 = vsel %vm52, %v34, 0
    %v57 = vsel %vm52, %v35, 0
    %59 = vmatprep.subr.bf16.mxu0 0
    %60 = vmatpush1.bf16.msra.mxu0 %v48
    %61 = vmatprep.subr.bf16.mxu0 0
    %62 = vmatpush1.bf16.msra.mxu0 %v49
    %63 = vmatprep.subr.bf16.mxu0 0
    %64 = vmatpush1.bf16.msra.mxu0 0
    %65 = vmatprep.subr.bf16.mxu0 0
    %66 = vmatpush1.bf16.msra.mxu0 0
    %67 = vmatprep.subr.bf16.mxu0 0
    %68 = vmatpush1.bf16.msra.mxu0 0
    %69 = vmatprep.subr.bf16.mxu0 0
    %70 = vmatpush1.bf16.msra.mxu0 0
    %71 = vmatprep.subr.bf16.mxu0 0
    %72 = vmatpush1.bf16.msra.mxu0 0
    %73 = vmatprep.subr.bf16.mxu0 0
    %74 = vmatpush1.bf16.msra.mxu0 0
    %75 = vmatprep.subr.bf16.mxu0 0
    %76 = vmatpush1.bf16.msra.mxu0 0
    %77 = vmatprep.subr.bf16.mxu0 0
    %78 = vmatpush1.bf16.msra.mxu0 0
    %79 = vmatprep.subr.bf16.mxu0 0
    %80 = vmatpush1.bf16.msra.mxu0 0
    %81 = vmatprep.subr.bf16.mxu0 0
    %82 = vmatpush1.bf16.msra.mxu0 0
    %83 = vmatprep.subr.bf16.mxu0 0
    %84 = vmatpush1.bf16.msra.mxu0 0
    %85 = vmatprep.subr.bf16.mxu0 0
    %86 = vmatpush1.bf16.msra.mxu0 0
    %87 = vmatprep.subr.bf16.mxu0 0
    %88 = vmatpush1.bf16.msra.mxu0 0
    %89 = vmatprep.subr.bf16.mxu0 0
    %90 = vmatpush1.bf16.msra.mxu0 0
    %91 = vmatprep.mubr.bf16.mxu0 0
    %92 = vmatmul.mubr.bf16.gmra.mrb[0].mxu0 %v54
    %v93 = vpop.f32.mrb[0].mxu0
    %v94 = vadd.f32 0.0, %v93
    %v95 = vpop.f32.mrb[0].mxu0
    %v96 = vpop.f32.mrb[0].mxu0
    %v97 = vadd.f32 0.0, %v96
    %v98 = vpop.f32.mrb[0].mxu0
    %99 = vmatprep.mubr.bf16.mxu0 0
    %100 = vmatmul.mubr.bf16.gmra.mrb[0].mxu0 %v57
    %v101 = vpop.f32.mrb[0].mxu0
    %v102 = vadd.f32 0.0, %v101
    %v103 = vpop.f32.mrb[0].mxu0
    %v104 = vpop.f32.mrb[0].mxu0
    %v105 = vadd.f32 0.0, %v104
    %v106 = vpop.f32.mrb[0].mxu0
    %107 = vdwg.mxu0
    %108 = vst [vmem:[#allocation2] sm:$0xff] %v94
    %109 = vst [vmem:[#allocation2 + $0x8] sm:$0xff] %v97
    %110 = vst [vmem:[#allocation2 + $0x10] sm:$0xff] %v102
    %111 = vst [vmem:[#allocation2 + $0x18] sm:$0xff] %v105
    %vm118 = vcmask 1046528
    %v119 = vrot.slane %v28, 1
    %v120 = vrot.slane %v29, 1
    %v121 = vsel %vm118, %v119, %v120
    %v122 = vrot.slane %v30, 1
    %v123 = vsel %vm118, %v120, %v122
    %v124 = vrot.slane %v31, 1
    %v125 = vrot.slane %v32, 1
    %v126 = vsel %vm118, %v124, %v125
    %v127 = vrot.slane %v33, 1
    %v128 = vsel %vm118, %v125, %v127
    %v133 = vpack.c.bf16 %v123, %v121
    %v134 = vpack.c.bf16 %v128, %v126
    %s135 = scalar_lea.vmem %s1, 16
    %v136 = vld [vmem:[%s135] sm:$0xf]
    %v137 = vld [vmem:[%s135 + $0x4] sm:$0xf]
    %v138 = vld [vmem:[%s135 + $0x8] sm:$0xf]
    %v139 = vld [vmem:[%s135 + $0xc] sm:$0xf]
    %v144 = vunpack.c.l.b16 %v136
    %v145 = vunpack.c.l.b16 %v137
    %v146 = vunpack.c.l.b16 %v138
    %v147 = vunpack.c.l.b16 %v139
    %v148 = vpack.c.b16 %v145, %v144
    %v149 = vpack.c.b16 %v147, %v146
    %v153 = vsel %vm52, %v133, 0
    %v156 = vsel %vm52, %v134, 0
    %158 = vmatprep.subr.bf16.mxu0 0
    %159 = vmatpush1.bf16.msra.mxu0 %v148
    %160 = vmatprep.subr.bf16.mxu0 0
    %161 = vmatpush1.bf16.msra.mxu0 %v149
    %162 = vmatprep.subr.bf16.mxu0 0
    %163 = vmatpush1.bf16.msra.mxu0 0
    %164 = vmatprep.subr.bf16.mxu0 0
    %165 = vmatpush1.bf16.msra.mxu0 0
    %166 = vmatprep.subr.bf16.mxu0 0
    %167 = vmatpush1.bf16.msra.mxu0 0
    %168 = vmatprep.subr.bf16.mxu0 0
    %169 = vmatpush1.bf16.msra.mxu0 0
    %170 = vmatprep.subr.bf16.mxu0 0
    %171 = vmatpush1.bf16.msra.mxu0 0
    %172 = vmatprep.subr.bf16.mxu0 0
    %173 = vmatpush1.bf16.msra.mxu0 0
    %174 = vmatprep.subr.bf16.mxu0 0
    %175 = vmatpush1.bf16.msra.mxu0 0
    %176 = vmatprep.subr.bf16.mxu0 0
    %177 = vmatpush1.bf16.msra.mxu0 0
    %178 = vmatprep.subr.bf16.mxu0 0
    %179 = vmatpush1.bf16.msra.mxu0 0
    %180 = vmatprep.subr.bf16.mxu0 0
    %181 = vmatpush1.bf16.msra.mxu0 0
    %182 = vmatprep.subr.bf16.mxu0 0
    %183 = vmatpush1.bf16.msra.mxu0 0
    %184 = vmatprep.subr.bf16.mxu0 0
    %185 = vmatpush1.bf16.msra.mxu0 0
    %186 = vmatprep.subr.bf16.mxu0 0
    %187 = vmatpush1.bf16.msra.mxu0 0
    %188 = vmatprep.subr.bf16.mxu0 0
    %189 = vmatpush1.bf16.msra.mxu0 0
    %190 = vmatprep.mubr.bf16.mxu0 0
    %191 = vmatmul.mubr.bf16.gmra.mrb[0].mxu0 %v153
    %v192 = vpop.f32.mrb[0].mxu0
    %v193 = vadd.f32 0.0, %v192
    %v194 = vpop.f32.mrb[0].mxu0
    %v195 = vpop.f32.mrb[0].mxu0
    %v196 = vadd.f32 0.0, %v195
    %v197 = vpop.f32.mrb[0].mxu0
    %198 = vmatprep.mubr.bf16.mxu0 0
    %199 = vmatmul.mubr.bf16.gmra.mrb[0].mxu0 %v156
    %v200 = vpop.f32.mrb[0].mxu0
    %v201 = vadd.f32 0.0, %v200
    %v202 = vpop.f32.mrb[0].mxu0
    %v203 = vpop.f32.mrb[0].mxu0
    %v204 = vadd.f32 0.0, %v203
    %v205 = vpop.f32.mrb[0].mxu0
    %206 = vdwg.mxu0
    %v207 = vld [vmem:[#allocation2] sm:$0xff]
    %v208 = vld [vmem:[#allocation2 + $0x8] sm:$0xff]
    %v209 = vld [vmem:[#allocation2 + $0x10] sm:$0xff]
    %v210 = vld [vmem:[#allocation2 + $0x18] sm:$0xff]
    %v211 = vadd.f32 %v207, %v193
    %v212 = vadd.f32 %v208, %v196
    %v213 = vadd.f32 %v209, %v201
    %v214 = vadd.f32 %v210, %v204
    %215 = vst [vmem:[#allocation2] sm:$0xff] %v211
    %216 = vst [vmem:[#allocation2 + $0x8] sm:$0xff] %v212
    %217 = vst [vmem:[#allocation2 + $0x10] sm:$0xff] %v213
    %218 = vst [vmem:[#allocation2 + $0x18] sm:$0xff] %v214
    %vm219 = vcmask 1045504
    %v220 = vrot.slane %v28, 2
    %v221 = vrot.slane %v29, 2
    %v222 = vsel %vm219, %v220, %v221
    %v223 = vrot.slane %v30, 2
    %v224 = vsel %vm219, %v221, %v223
    %v225 = vrot.slane %v31, 2
    %v226 = vrot.slane %v32, 2
    %v227 = vsel %vm219, %v225, %v226
    %v228 = vrot.slane %v33, 2
    %v229 = vsel %vm219, %v226, %v228
    %v234 = vpack.c.bf16 %v224, %v222
    %v235 = vpack.c.bf16 %v229, %v227
    %s236 = scalar_lea.vmem %s1, 32
    %v237 = vld [vmem:[%s236] sm:$0xf]
    %v238 = vld [vmem:[%s236 + $0x4] sm:$0xf]
    %v239 = vld [vmem:[%s236 + $0x8] sm:$0xf]
    %v240 = vld [vmem:[%s236 + $0xc] sm:$0xf]
    %v245 = vunpack.c.l.b16 %v237
    %v246 = vunpack.c.l.b16 %v238
    %v247 = vunpack.c.l.b16 %v239
    %v248 = vunpack.c.l.b16 %v240
    %v249 = vpack.c.b16 %v246, %v245
    %v250 = vpack.c.b16 %v248, %v247
    %v254 = vsel %vm52, %v234, 0
    %v257 = vsel %vm52, %v235, 0
    %259 = vmatprep.subr.bf16.mxu0 0
    %260 = vmatpush1.bf16.msra.mxu0 %v249
    %261 = vmatprep.subr.bf16.mxu0 0
    %262 = vmatpush1.bf16.msra.mxu0 %v250
    %263 = vmatprep.subr.bf16.mxu0 0
    %264 = vmatpush1.bf16.msra.mxu0 0
    %265 = vmatprep.subr.bf16.mxu0 0
    %266 = vmatpush1.bf16.msra.mxu0 0
    %267 = vmatprep.subr.bf16.mxu0 0
    %268 = vmatpush1.bf16.msra.mxu0 0
    %269 = vmatprep.subr.bf16.mxu0 0
    %270 = vmatpush1.bf16.msra.mxu0 0
    %271 = vmatprep.subr.bf16.mxu0 0
    %272 = vmatpush1.bf16.msra.mxu0 0
    %273 = vmatprep.subr.bf16.mxu0 0
    %274 = vmatpush1.bf16.msra.mxu0 0
    %275 = vmatprep.subr.bf16.mxu0 0
    %276 = vmatpush1.bf16.msra.mxu0 0
    %277 = vmatprep.subr.bf16.mxu0 0
    %278 = vmatpush1.bf16.msra.mxu0 0
    %279 = vmatprep.subr.bf16.mxu0 0
    %280 = vmatpush1.bf16.msra.mxu0 0
    %281 = vmatprep.subr.bf16.mxu0 0
    %282 = vmatpush1.bf16.msra.mxu0 0
    %283 = vmatprep.subr.bf16.mxu0 0
    %284 = vmatpush1.bf16.msra.mxu0 0
    %285 = vmatprep.subr.bf16.mxu0 0
    %286 = vmatpush1.bf16.msra.mxu0 0
    %287 = vmatprep.subr.bf16.mxu0 0
    %288 = vmatpush1.bf16.msra.mxu0 0
    %289 = vmatprep.subr.bf16.mxu0 0
    %290 = vmatpush1.bf16.msra.mxu0 0
    %291 = vmatprep.mubr.bf16.mxu0 0
    %292 = vmatmul.mubr.bf16.gmra.mrb[0].mxu0 %v254
    %v293 = vpop.f32.mrb[0].mxu0
    %v294 = vadd.f32 0.0, %v293
    %v295 = vpop.f32.mrb[0].mxu0
    %v296 = vpop.f32.mrb[0].mxu0
    %v297 = vadd.f32 0.0, %v296
    %v298 = vpop.f32.mrb[0].mxu0
    %299 = vmatprep.mubr.bf16.mxu0 0
    %300 = vmatmul.mubr.bf16.gmra.mrb[0].mxu0 %v257
    %v301 = vpop.f32.mrb[0].mxu0
    %v302 = vadd.f32 0.0, %v301
    %v303 = vpop.f32.mrb[0].mxu0
    %v304 = vpop.f32.mrb[0].mxu0
    %v305 = vadd.f32 0.0, %v304
    %v306 = vpop.f32.mrb[0].mxu0
    %307 = vdwg.mxu0
    %v308 = vld [vmem:[#allocation2] sm:$0xff]
    %v309 = vld [vmem:[#allocation2 + $0x8] sm:$0xff]
    %v310 = vld [vmem:[#allocation2 + $0x10] sm:$0xff]
    %v311 = vld [vmem:[#allocation2 + $0x18] sm:$0xff]
    %v312 = vadd.f32 %v308, %v294
    %v313 = vadd.f32 %v309, %v297
    %v314 = vadd.f32 %v310, %v302
    %v315 = vadd.f32 %v311, %v305
    %316 = vst [vmem:[#allocation2] sm:$0xff] %v312
    %317 = vst [vmem:[#allocation2 + $0x8] sm:$0xff] %v313
    %318 = vst [vmem:[#allocation2 + $0x10] sm:$0xff] %v314
    %319 = vst [vmem:[#allocation2 + $0x18] sm:$0xff] %v315
    %vm320 = vcmask 1044480
    %v321 = vrot.slane %v28, 3
    %v322 = vrot.slane %v29, 3
    %v323 = vsel %vm320, %v321, %v322
    %v324 = vrot.slane %v30, 3
    %v325 = vsel %vm320, %v322, %v324
    %v326 = vrot.slane %v31, 3
    %v327 = vrot.slane %v32, 3
    %v328 = vsel %vm320, %v326, %v327
    %v329 = vrot.slane %v33, 3
    %v330 = vsel %vm320, %v327, %v329
    %v335 = vpack.c.bf16 %v325, %v323
    %v336 = vpack.c.bf16 %v330, %v328
    %s337 = scalar_lea.vmem %s1, 48
    %v338 = vld [vmem:[%s337] sm:$0xf]
    %v339 = vld [vmem:[%s337 + $0x4] sm:$0xf]
    %v340 = vld [vmem:[%s337 + $0x8] sm:$0xf]
    %v341 = vld [vmem:[%s337 + $0xc] sm:$0xf]
    %v346 = vunpack.c.l.b16 %v338
    %v347 = vunpack.c.l.b16 %v339
    %v348 = vunpack.c.l.b16 %v340
    %v349 = vunpack.c.l.b16 %v341
    %v350 = vpack.c.b16 %v347, %v346
    %v351 = vpack.c.b16 %v349, %v348
    %v355 = vsel %vm52, %v335, 0
    %v358 = vsel %vm52, %v336, 0
    %360 = vmatprep.subr.bf16.mxu0 0
    %361 = vmatpush1.bf16.msra.mxu0 %v350
    %362 = vmatprep.subr.bf16.mxu0 0
    %363 = vmatpush1.bf16.msra.mxu0 %v351
    %364 = vmatprep.subr.bf16.mxu0 0
    %365 = vmatpush1.bf16.msra.mxu0 0
    %366 = vmatprep.subr.bf16.mxu0 0
    %367 = vmatpush1.bf16.msra.mxu0 0
    %368 = vmatprep.subr.bf16.mxu0 0
    %369 = vmatpush1.bf16.msra.mxu0 0
    %370 = vmatprep.subr.bf16.mxu0 0
    %371 = vmatpush1.bf16.msra.mxu0 0
    %372 = vmatprep.subr.bf16.mxu0 0
    %373 = vmatpush1.bf16.msra.mxu0 0
    %374 = vmatprep.subr.bf16.mxu0 0
    %375 = vmatpush1.bf16.msra.mxu0 0
    %376 = vmatprep.subr.bf16.mxu0 0
    %377 = vmatpush1.bf16.msra.mxu0 0
    %378 = vmatprep.subr.bf16.mxu0 0
    %379 = vmatpush1.bf16.msra.mxu0 0
    %380 = vmatprep.subr.bf16.mxu0 0
    %381 = vmatpush1.bf16.msra.mxu0 0
    %382 = vmatprep.subr.bf16.mxu0 0
    %383 = vmatpush1.bf16.msra.mxu0 0
    %384 = vmatprep.subr.bf16.mxu0 0
    %385 = vmatpush1.bf16.msra.mxu0 0
    %386 = vmatprep.subr.bf16.mxu0 0
    %387 = vmatpush1.bf16.msra.mxu0 0
    %388 = vmatprep.subr.bf16.mxu0 0
    %389 = vmatpush1.bf16.msra.mxu0 0
    %390 = vmatprep.subr.bf16.mxu0 0
    %391 = vmatpush1.bf16.msra.mxu0 0
    %392 = vmatprep.mubr.bf16.mxu0 0
    %393 = vmatmul.mubr.bf16.gmra.mrb[0].mxu0 %v355
    %v394 = vpop.f32.mrb[0].mxu0
    %v395 = vadd.f32 0.0, %v394
    %v396 = vpop.f32.mrb[0].mxu0
    %v397 = vpop.f32.mrb[0].mxu0
    %v398 = vadd.f32 0.0, %v397
    %v399 = vpop.f32.mrb[0].mxu0
    %400 = vmatprep.mubr.bf16.mxu0 0
    %401 = vmatmul.mubr.bf16.gmra.mrb[0].mxu0 %v358
    %v402 = vpop.f32.mrb[0].mxu0
    %v403 = vadd.f32 0.0, %v402
    %v404 = vpop.f32.mrb[0].mxu0
    %v405 = vpop.f32.mrb[0].mxu0
    %v406 = vadd.f32 0.0, %v405
    %v407 = vpop.f32.mrb[0].mxu0
    %408 = vdwg.mxu0
    %v409 = vld [vmem:[#allocation2] sm:$0xff]
    %v410 = vld [vmem:[#allocation2 + $0x8] sm:$0xff]
    %v411 = vld [vmem:[#allocation2 + $0x10] sm:$0xff]
    %v412 = vld [vmem:[#allocation2 + $0x18] sm:$0xff]
    %v413 = vadd.f32 %v409, %v395
    %v414 = vadd.f32 %v410, %v398
    %v415 = vadd.f32 %v411, %v403
    %v416 = vadd.f32 %v412, %v406
    %417 = vst [vmem:[#allocation2] sm:$0xff] %v413
    %418 = vst [vmem:[#allocation2 + $0x8] sm:$0xff] %v414
    %419 = vst [vmem:[#allocation2 + $0x10] sm:$0xff] %v415
    %420 = vst [vmem:[#allocation2 + $0x18] sm:$0xff] %v416
    %vm421 = vcmask 1043456
    %v422 = vrot.slane %v28, 4
    %v423 = vrot.slane %v29, 4
    %v424 = vsel %vm421, %v422, %v423
    %v425 = vrot.slane %v30, 4
    %v426 = vsel %vm421, %v423, %v425
    %v427 = vrot.slane %v31, 4
    %v428 = vrot.slane %v32, 4
    %v429 = vsel %vm421, %v427, %v428
    %v430 = vrot.slane %v33, 4
    %v431 = vsel %vm421, %v428, %v430
    %v436 = vpack.c.bf16 %v426, %v424
    %v437 = vpack.c.bf16 %v431, %v429
    %s438 = scalar_lea.vmem %s1, 64
    %v439 = vld [vmem:[%s438] sm:$0xf]
    %v440 = vld [vmem:[%s438 + $0x4] sm:$0xf]
    %v441 = vld [vmem:[%s438 + $0x8] sm:$0xf]
    %v442 = vld [vmem:[%s438 + $0xc] sm:$0xf]
    %v447 = vunpack.c.l.b16 %v439
    %v448 = vunpack.c.l.b16 %v440
    %v449 = vunpack.c.l.b16 %v441
    %v450 = vunpack.c.l.b16 %v442
    %v451 = vpack.c.b16 %v448, %v447
    %v452 = vpack.c.b16 %v450, %v449
    %v456 = vsel %vm52, %v436, 0
    %v459 = vsel %vm52, %v437, 0
    %461 = vmatprep.subr.bf16.mxu0 0
    %462 = vmatpush1.bf16.msra.mxu0 %v451
    %463 = vmatprep.subr.bf16.mxu0 0
    %464 = vmatpush1.bf16.msra.mxu0 %v452
    %465 = vmatprep.subr.bf16.mxu0 0
    %466 = vmatpush1.bf16.msra.mxu0 0
    %467 = vmatprep.subr.bf16.mxu0 0
    %468 = vmatpush1.bf16.msra.mxu0 0
    %469 = vmatprep.subr.bf16.mxu0 0
    %470 = vmatpush1.bf16.msra.mxu0 0
    %471 = vmatprep.subr.bf16.mxu0 0
    %472 = vmatpush1.bf16.msra.mxu0 0
    %473 = vmatprep.subr.bf16.mxu0 0
    %474 = vmatpush1.bf16.msra.mxu0 0
    %475 = vmatprep.subr.bf16.mxu0 0
    %476 = vmatpush1.bf16.msra.mxu0 0
    %477 = vmatprep.subr.bf16.mxu0 0
    %478 = vmatpush1.bf16.msra.mxu0 0
    %479 = vmatprep.subr.bf16.mxu0 0
    %480 = vmatpush1.bf16.msra.mxu0 0
    %481 = vmatprep.subr.bf16.mxu0 0
    %482 = vmatpush1.bf16.msra.mxu0 0
    %483 = vmatprep.subr.bf16.mxu0 0
    %484 = vmatpush1.bf16.msra.mxu0 0
    %485 = vmatprep.subr.bf16.mxu0 0
    %486 = vmatpush1.bf16.msra.mxu0 0
    %487 = vmatprep.subr.bf16.mxu0 0
    %488 = vmatpush1.bf16.msra.mxu0 0
    %489 = vmatprep.subr.bf16.mxu0 0
    %490 = vmatpush1.bf16.msra.mxu0 0
    %491 = vmatprep.subr.bf16.mxu0 0
    %492 = vmatpush1.bf16.msra.mxu0 0
    %493 = vmatprep.mubr.bf16.mxu0 0
    %494 = vmatmul.mubr.bf16.gmra.mrb[0].mxu0 %v456
    %v495 = vpop.f32.mrb[0].mxu0
    %v496 = vadd.f32 0.0, %v495
    %v497 = vpop.f32.mrb[0].mxu0
    %v498 = vpop.f32.mrb[0].mxu0
    %v499 = vadd.f32 0.0, %v498
    %v500 = vpop.f32.mrb[0].mxu0
    %501 = vmatprep.mubr.bf16.mxu0 0
    %502 = vmatmul.mubr.bf16.gmra.mrb[0].mxu0 %v459
    %v503 = vpop.f32.mrb[0].mxu0
    %v504 = vadd.f32 0.0, %v503
    %v505 = vpop.f32.mrb[0].mxu0
    %v506 = vpop.f32.mrb[0].mxu0
    %v507 = vadd.f32 0.0, %v506
    %v508 = vpop.f32.mrb[0].mxu0
    %509 = vdwg.mxu0
    %v510 = vld [vmem:[#allocation2] sm:$0xff]
    %v511 = vld [vmem:[#allocation2 + $0x8] sm:$0xff]
    %v512 = vld [vmem:[#allocation2 + $0x10] sm:$0xff]
    %v513 = vld [vmem:[#allocation2 + $0x18] sm:$0xff]
    %v514 = vadd.f32 %v510, %v496
    %v515 = vadd.f32 %v511, %v499
    %v516 = vadd.f32 %v512, %v504
    %v517 = vadd.f32 %v513, %v507
    %518 = vst [vmem:[#allocation2] sm:$0xff] %v514
    %519 = vst [vmem:[#allocation2 + $0x8] sm:$0xff] %v515
    %520 = vst [vmem:[#allocation2 + $0x10] sm:$0xff] %v516
    %521 = vst [vmem:[#allocation2 + $0x18] sm:$0xff] %v517
    %v522 = vld [vmem:[#allocation2] sm:$0xff]
    %v523 = vld [vmem:[#allocation2 + $0x8] sm:$0xff]
    %v524 = vld [vmem:[#allocation2 + $0x10] sm:$0xff]
    %v525 = vld [vmem:[#allocation2 + $0x18] sm:$0xff]
    %v526 = vld [vmem:[%s2] sm:$0x1]
    %v528 = vlaneseq
    %v529 = vshrl.u32 %v528, 7
    %v530 = vsub.s32 0, %v529
    %v531 = vrot.slane %v526, %v530
    %v533 = vadd.f32 %v522, %v531
    %v534 = vadd.f32 %v523, %v531
    %v535 = vadd.f32 %v524, %v531
    %v536 = vadd.f32 %v525, %v531
    %v537 = vmax.f32 %v533, 0.0
    %v538 = vmax.f32 %v534, 0.0
    %v539 = vmax.f32 %v535, 0.0
    %v540 = vmax.f32 %v536, 0.0
    %v541 = vlaneseq
    %v542 = vshrl.u32 %v541, 7
    %v543 = vadd.s32 %v542, 8
    %v544 = vlaneseq
    %v545 = vand.u32 %v544, 127
    %vm546 = vcmp.lt.s32.totalorder %v545, 8
    %vm547 = vcmp.lt.s32.totalorder %v545, 16
    %vm548 = vcmp.lt.s32.totalorder %v545, 24
    %v549 = vsel %vm548, 2, 0
    %v550 = vsel %vm547, 1, %v549
    %v551 = vsel %vm546, 0, %v550
    %v552 = vsub.s32 14, %v551
    %vm553 = vcmp.lt.s32.totalorder %v542, %v552
    %vm554 = vcmp.lt.s32.totalorder %v543, %v552
    %v555 = vsel %vm553, 1, 0
    %v556 = vsel %vm554, 1, 0
    %vm557 = vcmp.eq.s32.totalorder %v555, 1
    %vm558 = vcmp.eq.s32.totalorder %v556, 1
    %v559 = vsel %vm557, %v537, 0.0
    %v560 = vsel %vm558, %v538, 0.0
    %v561 = vsel %vm557, %v539, 0.0
    %v562 = vsel %vm558, %v540, 0.0
    %v563 = vmax.f32 %v559, %v560
    %v564 = vrot.slane %v563, 4
    %v565 = vmax.f32 %v563, %v564
    %v566 = vrot.slane %v565, 2
    %v567 = vmax.f32 %v565, %v566
    %v568 = vrot.slane %v567, 1
    %v569 = vmax.f32 %v567, %v568
    %v570 = vmax.f32 %v561, %v562
    %v571 = vrot.slane %v570, 4
    %v572 = vmax.f32 %v570, %v571
    %v573 = vrot.slane %v572, 2
    %v574 = vmax.f32 %v572, %v573
    %v575 = vrot.slane %v574, 1
    %v576 = vmax.f32 %v574, %v575
    %v577 = vpack.c.bf16 %v569, %v569
    %v578 = vpack.c.bf16 %v576, %v576
    %v579 = vld [vmem:[%s3] sm:$0xf]
    %v580 = vld [vmem:[%s3 + $0x4] sm:$0xf]
    %v581 = vld [vmem:[%s3 + $0x8] sm:$0xf]
    %v582 = vld [vmem:[%s3 + $0xc] sm:$0xf]
    %v583 = vld [vmem:[%s3 + $0x10] sm:$0xf]
    %v584 = vld [vmem:[%s3 + $0x14] sm:$0xf]
    %v585 = vld [vmem:[%s3 + $0x18] sm:$0xf]
    %v586 = vld [vmem:[%s3 + $0x1c] sm:$0xf]
    %v587 = vld [vmem:[%s3 + $0x20] sm:$0xf]
    %v588 = vld [vmem:[%s3 + $0x24] sm:$0xf]
    %v589 = vld [vmem:[%s3 + $0x28] sm:$0xf]
    %v590 = vld [vmem:[%s3 + $0x2c] sm:$0xf]
    %v591 = vld [vmem:[%s3 + $0x30] sm:$0xf]
    %v592 = vld [vmem:[%s3 + $0x34] sm:$0xf]
    %v593 = vld [vmem:[%s3 + $0x38] sm:$0xf]
    %v594 = vld [vmem:[%s3 + $0x3c] sm:$0xf]
    %v595 = vld [vmem:[%s4] sm:$0x1]
    %v597 = vlaneseq
    %v598 = vshrl.u32 %v597, 7
    %v599 = vsub.s32 0, %v598
    %v600 = vrot.slane %v595, %v599
    %v604 = vunpack.c.l.b16 %v577
    %v605 = vunpack.c.l.b16 %v578
    %vm606 = vcmask 1041409
    %v607 = vsel %vm606, %v605, %v604
    %v608 = vpack.c.b16 %v607, %v607
    %v626 = vunpack.c.l.b16 %v579
    %v627 = vunpack.c.l.b16 %v580
    %v628 = vunpack.c.l.b16 %v581
    %v629 = vunpack.c.l.b16 %v582
    %v630 = vunpack.c.l.b16 %v583
    %v631 = vunpack.c.l.b16 %v584
    %v632 = vunpack.c.l.b16 %v585
    %v633 = vunpack.c.l.b16 %v586
    %v634 = vunpack.c.l.b16 %v587
    %v635 = vunpack.c.l.b16 %v588
    %v636 = vunpack.c.l.b16 %v589
    %v637 = vunpack.c.l.b16 %v590
    %v638 = vunpack.c.l.b16 %v591
    %v639 = vunpack.c.l.b16 %v592
    %v640 = vunpack.c.l.b16 %v593
    %v641 = vunpack.c.l.b16 %v594
    %v642 = vpack.c.b16 %v627, %v626
    %v643 = vpack.c.b16 %v629, %v628
    %v644 = vpack.c.b16 %v631, %v630
    %v645 = vpack.c.b16 %v633, %v632
    %v646 = vpack.c.b16 %v635, %v634
    %v647 = vpack.c.b16 %v637, %v636
    %v648 = vpack.c.b16 %v639, %v638
    %v649 = vpack.c.b16 %v641, %v640
    %658 = vmatprep.subr.bf16.mxu0 0
    %659 = vmatpush1.bf16.msra.mxu0 %v642
    %660 = vmatprep.subr.bf16.mxu0 0
    %661 = vmatpush1.bf16.msra.mxu0 %v643
    %662 = vmatprep.subr.bf16.mxu0 0
    %663 = vmatpush1.bf16.msra.mxu0 %v644
    %664 = vmatprep.subr.bf16.mxu0 0
    %665 = vmatpush1.bf16.msra.mxu0 %v645
    %666 = vmatprep.subr.bf16.mxu0 0
    %667 = vmatpush1.bf16.msra.mxu0 %v646
    %668 = vmatprep.subr.bf16.mxu0 0
    %669 = vmatpush1.bf16.msra.mxu0 %v647
    %670 = vmatprep.subr.bf16.mxu0 0
    %671 = vmatpush1.bf16.msra.mxu0 %v648
    %672 = vmatprep.subr.bf16.mxu0 0
    %673 = vmatpush1.bf16.msra.mxu0 %v649
    %674 = vmatprep.subr.bf16.mxu0 0
    %675 = vmatpush1.bf16.msra.mxu0 0
    %676 = vmatprep.subr.bf16.mxu0 0
    %677 = vmatpush1.bf16.msra.mxu0 0
    %678 = vmatprep.subr.bf16.mxu0 0
    %679 = vmatpush1.bf16.msra.mxu0 0
    %680 = vmatprep.subr.bf16.mxu0 0
    %681 = vmatpush1.bf16.msra.mxu0 0
    %682 = vmatprep.subr.bf16.mxu0 0
    %683 = vmatpush1.bf16.msra.mxu0 0
    %684 = vmatprep.subr.bf16.mxu0 0
    %685 = vmatpush1.bf16.msra.mxu0 0
    %686 = vmatprep.subr.bf16.mxu0 0
    %687 = vmatpush1.bf16.msra.mxu0 0
    %688 = vmatprep.subr.bf16.mxu0 0
    %689 = vmatpush1.bf16.msra.mxu0 0
    %690 = vmatprep.mubr.bf16.mxu0 0
    %691 = vmatmul.mubr.bf16.gmra.mrb[0].mxu0 %v608
    %v692 = vpop.f32.mrb[0].mxu0
    %v693 = vadd.f32 %v600, %v692
    %v694 = vpop.f32.mrb[0].mxu0
    %v695 = vpop.f32.mrb[0].mxu0
    %v696 = vpop.f32.mrb[0].mxu0
    %697 = vdwg.mxu0
    %698 = vst [vmem:[#allocation3] sm:$0x3] %v693
    // Predicated region
    $region22: #{cnn_forward.1} parent=1 // pred_check
      _
    $region23: #{cnn_forward.1} parent=1 // pred_check_branch
      %700 = sbr.rel (0) target = $region25
    $region24: #{cnn_forward.1} parent=1 // pred_region
      %s702 = ssub.s32 32, 32
      %703 = vsyncadd [#allocation4], %s702
      %s705 = sshll.u32 [#allocation3], 4
      %s706 = int_to_ptr.vmem [resolvable:$true] %s705
      %708 = dma.vmem_to_hbm [thread:$0]  %s706, 32, %s5, [#allocation4]
    $region25: #{cnn_forward.1} parent=1 // pred_fallthru
      _
    // Predicated region
    $region26: #{cnn_forward.1} parent=1 // pred_check
      _
    $region27: #{cnn_forward.1} parent=1 // pred_check_branch
      %710 = sbr.rel (0) target = $region29
    $region28: #{cnn_forward.1} parent=1 // pred_region
      %711 = dma.done [#allocation4], 32
    $region29: #{cnn_forward.1} parent=1 // pred_fallthru
      _
    %712 = vsyncpa [#allocation4], 1

</llo_original>
